<compile_context>
chip_gen: v5e
topology: v5e:2x2
jax: 0.10.0
libtpu: 0.0.40
codegen_flags: <defaults>
</compile_context>

<pallas_src>
import functools

import jax
import jax.numpy as jnp
from jax.experimental import pallas as pl
from jax.experimental.pallas import tpu as pltpu

LN_EPS = 1e-5  # PyTorch nn.LayerNorm default
# RReLU(lower, upper) in eval mode == leaky relu with slope (lower+upper)/2
RRELU_SLOPES = ((0.01 + 0.33) / 2.0, (0.33 + 0.66) / 2.0, (0.66 + 0.99) / 2.0)

OUT_PAD = 128    # lane-dense padded width of the mu head
SLAB_ROWS = 16   # rows in the packed bias/gamma/beta slab


def _round_up(v, m):
    return ((v + m - 1) // m) * m


def _actor_kernel(x_ref, w1, w2, w3, w4, wmu, vec, out_ref, *,
                  hidden, h2, out_pad):
    """Fused MLP: (Linear + LayerNorm [+ leaky-relu]) x 4, then sigmoid(mu).

    Weight matrices are bf16 (MXU inputs); `vec` is a f32 (16, SLAB_W) slab:
      rows 0-2  : b1, gamma1, beta1      (width = hidden)
      rows 3-5  : b2, gamma2, beta2      (width = hidden)
      rows 6-8  : b3, gamma3, beta3      (width = hidden)
      rows 9-11 : b4, gamma4, beta4      (width = hidden // 2)
      row  12   : mu bias                (width = out_pad)
    """

    def mm(x, w_ref):
        # bf16 MXU matmul with f32 accumulation; operands cast, math not.
        return jnp.dot(x.astype(jnp.bfloat16), w_ref[...],
                       preferred_element_type=jnp.float32)

    def bias_layernorm(h, row, width):
        b = vec[row + 0:row + 1, :width]
        g = vec[row + 1:row + 2, :width]
        be = vec[row + 2:row + 3, :width]
        h = h + b
        # single-pass statistics: var = E[h^2] - mean^2 (biased, like PyTorch)
        m1 = jnp.mean(h, axis=-1, keepdims=True)
        m2 = jnp.mean(h * h, axis=-1, keepdims=True)
        var = jnp.maximum(m2 - m1 * m1, 0.0)
        return (h - m1) * jax.lax.rsqrt(var + LN_EPS) * g + be

    x = x_ref[...]

    h = bias_layernorm(mm(x, w1), 0, hidden)
    h = jnp.where(h >= 0, h, RRELU_SLOPES[0] * h)

    h = bias_layernorm(mm(h, w2), 3, hidden)
    h = jnp.where(h >= 0, h, RRELU_SLOPES[1] * h)

    h = bias_layernorm(mm(h, w3), 6, hidden)
    h = jnp.where(h >= 0, h, RRELU_SLOPES[2] * h)

    h = bias_layernorm(mm(h, w4), 9, h2)
    # Dropout: identity in eval mode.

    bmu = vec[12:13, :out_pad]
    out_ref[...] = jax.nn.sigmoid(mm(h, wmu) + bmu)


def _choose_batch_tile(batch):
    """Pick a batch tile: big enough to fill the MXU, but >=2 grid steps when
    possible so the parallel axis can shard across v7x's two TensorCores."""
    b8 = _round_up(batch, 8)
    if b8 <= 8:
        return 8
    return min(256, _round_up(-(-b8 // 2), 8))


@functools.partial(jax.jit, static_argnames=("hidden_size", "num_outputs"))
def actor_forward(states, packed, *, hidden_size, num_outputs):
    """states: (batch, num_inputs) float32. Returns (batch, num_outputs)."""
    B, D = states.shape
    h = hidden_size

    bt = _choose_batch_tile(B)
    Bp = _round_up(B, bt)
    if Bp != B:
        x = jnp.zeros((Bp, D), jnp.float32).at[:B].set(states)
    else:
        x = states

    weights = [packed["w1"], packed["w2"], packed["w3"], packed["w4"],
               packed["wmu"], packed["vec"]]

    kernel = functools.partial(_actor_kernel, hidden=h, h2=h // 2,
                               out_pad=OUT_PAD)

    out = pl.pallas_call(
        kernel,
        out_shape=jax.ShapeDtypeStruct((Bp, OUT_PAD), jnp.float32),
        grid_spec=pltpu.PrefetchScalarGridSpec(
            num_scalar_prefetch=0,
            grid=(pl.cdiv(Bp, bt),),
            in_specs=[pl.BlockSpec((bt, D), lambda i: (i, 0))]
                     + [pl.BlockSpec(w.shape, lambda i: (0, 0))
                        for w in weights],
            out_specs=pl.BlockSpec((bt, OUT_PAD), lambda i: (i, 0)),
        ),
        compiler_params=pltpu.CompilerParams(
            dimension_semantics=("parallel",),   # batch tiles are independent
        ),
    )(x, *weights)

    return out[:B, :num_outputs]


def init_params(key, num_inputs, hidden_size, num_outputs):
    """PyTorch-style init. Linear weights stored transposed: (in, out)."""
    def linear(key, d_in, d_out, scale=1.0):
        k = 1.0 / jnp.sqrt(jnp.float32(d_in))
        k1, k2 = jax.random.split(key)
        w = jax.random.uniform(k1, (d_in, d_out), jnp.float32, -k, k) * scale
        b = jax.random.uniform(k2, (1, d_out), jnp.float32, -k, k) * scale
        return w, b

    def ln(d):
        return jnp.ones((1, d), jnp.float32), jnp.zeros((1, d), jnp.float32)

    h, h2 = hidden_size, hidden_size // 2
    key, k1, k2, k3, k4, k5 = jax.random.split(key, 6)
    w1, b1 = linear(k1, num_inputs, h)
    g1, be1 = ln(h)
    w2, b2 = linear(k2, h, h)
    g2, be2 = ln(h)
    w3, b3 = linear(k3, h, h)
    g3, be3 = ln(h)
    w4, b4 = linear(k4, h, h2)
    g4, be4 = ln(h2)
    wmu, bmu = linear(k5, h2, num_outputs, scale=0.1)  # mu.weight/bias *= 0.1
    return {
        "hidden": (
            (w1, b1, g1, be1),
            (w2, b2, g2, be2),
            (w3, b3, g3, be3),
            (w4, b4, g4, be4),
        ),
        "mu": (wmu, bmu),
    }


def pack_params(params, *, hidden_size, num_outputs):
    """Kernel-side layout: bf16 weight matrices + one f32 (16, SLAB_W) slab
    holding all bias / gamma / beta / mu-bias vectors (done once, outside the
    per-call jitted path)."""
    h, h2 = hidden_size, hidden_size // 2
    slab_w = max(_round_up(h, 128), OUT_PAD)

    (l1, l2, l3, l4) = params["hidden"]
    (w1, b1, g1, be1) = l1
    (w2, b2, g2, be2) = l2
    (w3, b3, g3, be3) = l3
    (w4, b4, g4, be4) = l4
    wmu, bmu = params["mu"]

    wmu_p = jnp.zeros((h2, OUT_PAD), jnp.float32).at[:, :num_outputs].set(wmu)

    rows = [(b1, h), (g1, h), (be1, h),
            (b2, h), (g2, h), (be2, h),
            (b3, h), (g3, h), (be3, h),
            (b4, h2), (g4, h2), (be4, h2),
            (bmu, num_outputs)]
    vec = jnp.zeros((SLAB_ROWS, slab_w), jnp.float32)
    for r, (v, w) in enumerate(rows):
        vec = vec.at[r, :w].set(v.reshape(-1))

    bf16 = jnp.bfloat16
    return {
        "w1": w1.astype(bf16), "w2": w2.astype(bf16),
        "w3": w3.astype(bf16), "w4": w4.astype(bf16),
        "wmu": wmu_p.astype(bf16), "vec": vec,
    }


def actor_ref(states, params, *, bf16_matmul=False):
    """Pure-JAX reference (eval-mode forward) for correctness check."""
    def mm(x, w):
        if bf16_matmul:
            return jnp.dot(x.astype(jnp.bfloat16), w.astype(jnp.bfloat16),
                           preferred_element_type=jnp.float32)
        return x @ w

    x = states
    for idx, (w, b, g, be) in enumerate(params["hidden"]):
        h = mm(x, w) + b
        mean = h.mean(axis=-1, keepdims=True)
        var = ((h - mean) ** 2).mean(axis=-1, keepdims=True)
        h = (h - mean) / jnp.sqrt(var + LN_EPS) * g + be
        if idx < 3:
            h = jnp.where(h >= 0, h, RRELU_SLOPES[idx] * h)
        x = h
    wmu, bmu = params["mu"]
    return jax.nn.sigmoid(mm(x, wmu) + bmu)


if __name__ == "__main__":
    batch = 2
    num_inputs = 64
    hidden_size = 128     # lane-aligned hidden width
    num_outputs = 4

    key = jax.random.PRNGKey(0)
    pkey, xkey, x2key = jax.random.split(key, 3)
    params = init_params(pkey, num_inputs, hidden_size, num_outputs)
    packed = pack_params(params, hidden_size=hidden_size,
                         num_outputs=num_outputs)

    # small case (single grid step)
    states = jax.random.normal(xkey, (batch, num_inputs), jnp.float32)
    out = actor_forward(states, packed,
                        hidden_size=hidden_size, num_outputs=num_outputs)
    out = jax.block_until_ready(out)
    assert out.shape == (batch, num_outputs), out.shape

    ref_matched = actor_ref(states, params, bf16_matmul=True)
    ref_f32 = actor_ref(states, params, bf16_matmul=False)
    assert jnp.allclose(out, ref_matched, atol=2e-3, rtol=2e-3), (out, ref_matched)
    assert jnp.allclose(out, ref_f32, atol=3e-2, rtol=3e-2), (out, ref_f32)

    # slightly larger case exercising the multi-tile (grid > 1) path
    states2 = jax.random.normal(x2key, (48, num_inputs), jnp.float32)
    out2 = jax.block_until_ready(
        actor_forward(states2, packed,
                      hidden_size=hidden_size, num_outputs=num_outputs))
    ref2 = actor_ref(states2, params, bf16_matmul=True)
    assert out2.shape == (48, num_outputs), out2.shape
    assert jnp.allclose(out2, ref2, atol=2e-3, rtol=2e-3), (out2, ref2)

    print("KERNEL_OK")
</pallas_src>

<mosaic_0001>
module attributes {stable_mosaic.version = 11 : i64} {
  func.func @_actor_kernel(%arg0: i32, %arg1: memref<8x64xf32, #tpu.memory_space<vmem>>, %arg2: memref<64x128xbf16, #tpu.memory_space<vmem>>, %arg3: memref<128x128xbf16, #tpu.memory_space<vmem>>, %arg4: memref<128x128xbf16, #tpu.memory_space<vmem>>, %arg5: memref<128x64xbf16, #tpu.memory_space<vmem>>, %arg6: memref<64x128xbf16, #tpu.memory_space<vmem>>, %arg7: memref<16x128xf32, #tpu.memory_space<vmem>>, %arg8: memref<8x128xf32, #tpu.memory_space<vmem>>) attributes {dimension_semantics = [#tpu.dimension_semantics<parallel>], iteration_bounds = array<i64: 1>, scalar_prefetch = 0 : i64, scratch_operands = 0 : i64, tpu.core_type = #tpu.core_type<tc>, window_params = [{transform_indices = @transform_0, window_bounds = array<i64: 8, 64>}, {pipeline_mode = #tpu.pipeline_mode<synchronous>, transform_indices = @transform_1, window_bounds = array<i64: 64, 128>}, {pipeline_mode = #tpu.pipeline_mode<synchronous>, transform_indices = @transform_2, window_bounds = array<i64: 128, 128>}, {pipeline_mode = #tpu.pipeline_mode<synchronous>, transform_indices = @transform_3, window_bounds = array<i64: 128, 128>}, {pipeline_mode = #tpu.pipeline_mode<synchronous>, transform_indices = @transform_4, window_bounds = array<i64: 128, 64>}, {pipeline_mode = #tpu.pipeline_mode<synchronous>, transform_indices = @transform_5, window_bounds = array<i64: 64, 128>}, {pipeline_mode = #tpu.pipeline_mode<synchronous>, transform_indices = @transform_6, window_bounds = array<i64: 16, 128>}, {transform_indices = @transform_7, window_bounds = array<i64: 8, 128>}]} {
    %c0 = arith.constant 0 : index
    %c0_0 = arith.constant 0 : index
    %0 = vector.load %arg1[%c0, %c0_0] : memref<8x64xf32, #tpu.memory_space<vmem>>, vector<8x64xf32>
    %1 = arith.truncf %0 : vector<8x64xf32> to vector<8x64xbf16>
    %c0_1 = arith.constant 0 : index
    %c0_2 = arith.constant 0 : index
    %2 = vector.load %arg2[%c0_1, %c0_2] : memref<64x128xbf16, #tpu.memory_space<vmem>>, vector<64x128xbf16>
    %cst = arith.constant dense<0.000000e+00> : vector<8x128xf32>
    %3 = tpu.matmul %1, %2, %cst {dimension_numbers = #tpu.dot_dimension_numbers<[1], [0], [0], [1], [0, 0, 1, 1], [], []>} : vector<8x64xbf16>, vector<64x128xbf16>, vector<8x128xf32> -> vector<8x128xf32>
    %c0_3 = arith.constant 0 : index
    %c0_4 = arith.constant 0 : index
    %4 = vector.load %arg7[%c0_3, %c0_4] : memref<16x128xf32, #tpu.memory_space<vmem>>, vector<1x128xf32>
    %c1 = arith.constant 1 : index
    %c0_5 = arith.constant 0 : index
    %5 = vector.load %arg7[%c1, %c0_5] : memref<16x128xf32, #tpu.memory_space<vmem>>, vector<1x128xf32>
    %c2 = arith.constant 2 : index
    %c0_6 = arith.constant 0 : index
    %6 = vector.load %arg7[%c2, %c0_6] : memref<16x128xf32, #tpu.memory_space<vmem>>, vector<1x128xf32>
    %7 = vector.broadcast %4 : vector<1x128xf32> to vector<8x128xf32>
    %8 = arith.addf %3, %7 : vector<8x128xf32>
    %cst_7 = arith.constant dense<0.000000e+00> : vector<8xf32>
    %9 = vector.multi_reduction <add>, %8, %cst_7 [1] : vector<8x128xf32> to vector<8xf32>
    %10 = vector.shape_cast %9 : vector<8xf32> to vector<8x1xf32>
    %cst_8 = arith.constant 1.280000e+02 : f32
    %11 = vector.broadcast %cst_8 : f32 to vector<8x1xf32>
    %12 = arith.divf %10, %11 : vector<8x1xf32>
    %13 = arith.mulf %8, %8 : vector<8x128xf32>
    %cst_9 = arith.constant dense<0.000000e+00> : vector<8xf32>
    %14 = vector.multi_reduction <add>, %13, %cst_9 [1] : vector<8x128xf32> to vector<8xf32>
    %15 = vector.shape_cast %14 : vector<8xf32> to vector<8x1xf32>
    %cst_10 = arith.constant 1.280000e+02 : f32
    %16 = vector.broadcast %cst_10 : f32 to vector<8x1xf32>
    %17 = arith.divf %15, %16 : vector<8x1xf32>
    %18 = arith.mulf %12, %12 : vector<8x1xf32>
    %19 = arith.subf %17, %18 : vector<8x1xf32>
    %cst_11 = arith.constant 0.000000e+00 : f32
    %20 = vector.broadcast %cst_11 : f32 to vector<8x1xf32>
    %21 = arith.maximumf %19, %20 : vector<8x1xf32>
    %22 = vector.broadcast %12 : vector<8x1xf32> to vector<8x128xf32>
    %23 = arith.subf %8, %22 : vector<8x128xf32>
    %cst_12 = arith.constant 9.99999974E-6 : f32
    %24 = vector.broadcast %cst_12 : f32 to vector<8x1xf32>
    %25 = arith.addf %21, %24 : vector<8x1xf32>
    %26 = math.rsqrt %25 : vector<8x1xf32>
    %27 = vector.broadcast %26 : vector<8x1xf32> to vector<8x128xf32>
    %28 = arith.mulf %23, %27 : vector<8x128xf32>
    %29 = vector.broadcast %5 : vector<1x128xf32> to vector<8x128xf32>
    %30 = arith.mulf %28, %29 : vector<8x128xf32>
    %31 = vector.broadcast %6 : vector<1x128xf32> to vector<8x128xf32>
    %32 = arith.addf %30, %31 : vector<8x128xf32>
    %cst_13 = arith.constant 0.000000e+00 : f32
    %33 = vector.broadcast %cst_13 : f32 to vector<8x128xf32>
    %34 = arith.cmpf oge, %32, %33 : vector<8x128xf32>
    %cst_14 = arith.constant 1.700000e-01 : f32
    %35 = vector.broadcast %cst_14 : f32 to vector<8x128xf32>
    %36 = arith.mulf %35, %32 : vector<8x128xf32>
    %37 = arith.select %34, %32, %36 : vector<8x128xi1>, vector<8x128xf32>
    %38 = arith.truncf %37 : vector<8x128xf32> to vector<8x128xbf16>
    %c0_15 = arith.constant 0 : index
    %c0_16 = arith.constant 0 : index
    %39 = vector.load %arg3[%c0_15, %c0_16] : memref<128x128xbf16, #tpu.memory_space<vmem>>, vector<128x128xbf16>
    %cst_17 = arith.constant dense<0.000000e+00> : vector<8x128xf32>
    %40 = tpu.matmul %38, %39, %cst_17 {dimension_numbers = #tpu.dot_dimension_numbers<[1], [0], [0], [1], [0, 0, 1, 1], [], []>} : vector<8x128xbf16>, vector<128x128xbf16>, vector<8x128xf32> -> vector<8x128xf32>
    %c3 = arith.constant 3 : index
    %c0_18 = arith.constant 0 : index
    %41 = vector.load %arg7[%c3, %c0_18] : memref<16x128xf32, #tpu.memory_space<vmem>>, vector<1x128xf32>
    %c4 = arith.constant 4 : index
    %c0_19 = arith.constant 0 : index
    %42 = vector.load %arg7[%c4, %c0_19] : memref<16x128xf32, #tpu.memory_space<vmem>>, vector<1x128xf32>
    %c5 = arith.constant 5 : index
    %c0_20 = arith.constant 0 : index
    %43 = vector.load %arg7[%c5, %c0_20] : memref<16x128xf32, #tpu.memory_space<vmem>>, vector<1x128xf32>
    %44 = vector.broadcast %41 : vector<1x128xf32> to vector<8x128xf32>
    %45 = arith.addf %40, %44 : vector<8x128xf32>
    %cst_21 = arith.constant dense<0.000000e+00> : vector<8xf32>
    %46 = vector.multi_reduction <add>, %45, %cst_21 [1] : vector<8x128xf32> to vector<8xf32>
    %47 = vector.shape_cast %46 : vector<8xf32> to vector<8x1xf32>
    %cst_22 = arith.constant 1.280000e+02 : f32
    %48 = vector.broadcast %cst_22 : f32 to vector<8x1xf32>
    %49 = arith.divf %47, %48 : vector<8x1xf32>
    %50 = arith.mulf %45, %45 : vector<8x128xf32>
    %cst_23 = arith.constant dense<0.000000e+00> : vector<8xf32>
    %51 = vector.multi_reduction <add>, %50, %cst_23 [1] : vector<8x128xf32> to vector<8xf32>
    %52 = vector.shape_cast %51 : vector<8xf32> to vector<8x1xf32>
    %cst_24 = arith.constant 1.280000e+02 : f32
    %53 = vector.broadcast %cst_24 : f32 to vector<8x1xf32>
    %54 = arith.divf %52, %53 : vector<8x1xf32>
    %55 = arith.mulf %49, %49 : vector<8x1xf32>
    %56 = arith.subf %54, %55 : vector<8x1xf32>
    %cst_25 = arith.constant 0.000000e+00 : f32
    %57 = vector.broadcast %cst_25 : f32 to vector<8x1xf32>
    %58 = arith.maximumf %56, %57 : vector<8x1xf32>
    %59 = vector.broadcast %49 : vector<8x1xf32> to vector<8x128xf32>
    %60 = arith.subf %45, %59 : vector<8x128xf32>
    %cst_26 = arith.constant 9.99999974E-6 : f32
    %61 = vector.broadcast %cst_26 : f32 to vector<8x1xf32>
    %62 = arith.addf %58, %61 : vector<8x1xf32>
    %63 = math.rsqrt %62 : vector<8x1xf32>
    %64 = vector.broadcast %63 : vector<8x1xf32> to vector<8x128xf32>
    %65 = arith.mulf %60, %64 : vector<8x128xf32>
    %66 = vector.broadcast %42 : vector<1x128xf32> to vector<8x128xf32>
    %67 = arith.mulf %65, %66 : vector<8x128xf32>
    %68 = vector.broadcast %43 : vector<1x128xf32> to vector<8x128xf32>
    %69 = arith.addf %67, %68 : vector<8x128xf32>
    %cst_27 = arith.constant 0.000000e+00 : f32
    %70 = vector.broadcast %cst_27 : f32 to vector<8x128xf32>
    %71 = arith.cmpf oge, %69, %70 : vector<8x128xf32>
    %cst_28 = arith.constant 4.950000e-01 : f32
    %72 = vector.broadcast %cst_28 : f32 to vector<8x128xf32>
    %73 = arith.mulf %72, %69 : vector<8x128xf32>
    %74 = arith.select %71, %69, %73 : vector<8x128xi1>, vector<8x128xf32>
    %75 = arith.truncf %74 : vector<8x128xf32> to vector<8x128xbf16>
    %c0_29 = arith.constant 0 : index
    %c0_30 = arith.constant 0 : index
    %76 = vector.load %arg4[%c0_29, %c0_30] : memref<128x128xbf16, #tpu.memory_space<vmem>>, vector<128x128xbf16>
    %cst_31 = arith.constant dense<0.000000e+00> : vector<8x128xf32>
    %77 = tpu.matmul %75, %76, %cst_31 {dimension_numbers = #tpu.dot_dimension_numbers<[1], [0], [0], [1], [0, 0, 1, 1], [], []>} : vector<8x128xbf16>, vector<128x128xbf16>, vector<8x128xf32> -> vector<8x128xf32>
    %c6 = arith.constant 6 : index
    %c0_32 = arith.constant 0 : index
    %78 = vector.load %arg7[%c6, %c0_32] : memref<16x128xf32, #tpu.memory_space<vmem>>, vector<1x128xf32>
    %c7 = arith.constant 7 : index
    %c0_33 = arith.constant 0 : index
    %79 = vector.load %arg7[%c7, %c0_33] : memref<16x128xf32, #tpu.memory_space<vmem>>, vector<1x128xf32>
    %c8 = arith.constant 8 : index
    %c0_34 = arith.constant 0 : index
    %80 = vector.load %arg7[%c8, %c0_34] : memref<16x128xf32, #tpu.memory_space<vmem>>, vector<1x128xf32>
    %81 = vector.broadcast %78 : vector<1x128xf32> to vector<8x128xf32>
    %82 = arith.addf %77, %81 : vector<8x128xf32>
    %cst_35 = arith.constant dense<0.000000e+00> : vector<8xf32>
    %83 = vector.multi_reduction <add>, %82, %cst_35 [1] : vector<8x128xf32> to vector<8xf32>
    %84 = vector.shape_cast %83 : vector<8xf32> to vector<8x1xf32>
    %cst_36 = arith.constant 1.280000e+02 : f32
    %85 = vector.broadcast %cst_36 : f32 to vector<8x1xf32>
    %86 = arith.divf %84, %85 : vector<8x1xf32>
    %87 = arith.mulf %82, %82 : vector<8x128xf32>
    %cst_37 = arith.constant dense<0.000000e+00> : vector<8xf32>
    %88 = vector.multi_reduction <add>, %87, %cst_37 [1] : vector<8x128xf32> to vector<8xf32>
    %89 = vector.shape_cast %88 : vector<8xf32> to vector<8x1xf32>
    %cst_38 = arith.constant 1.280000e+02 : f32
    %90 = vector.broadcast %cst_38 : f32 to vector<8x1xf32>
    %91 = arith.divf %89, %90 : vector<8x1xf32>
    %92 = arith.mulf %86, %86 : vector<8x1xf32>
    %93 = arith.subf %91, %92 : vector<8x1xf32>
    %cst_39 = arith.constant 0.000000e+00 : f32
    %94 = vector.broadcast %cst_39 : f32 to vector<8x1xf32>
    %95 = arith.maximumf %93, %94 : vector<8x1xf32>
    %96 = vector.broadcast %86 : vector<8x1xf32> to vector<8x128xf32>
    %97 = arith.subf %82, %96 : vector<8x128xf32>
    %cst_40 = arith.constant 9.99999974E-6 : f32
    %98 = vector.broadcast %cst_40 : f32 to vector<8x1xf32>
    %99 = arith.addf %95, %98 : vector<8x1xf32>
    %100 = math.rsqrt %99 : vector<8x1xf32>
    %101 = vector.broadcast %100 : vector<8x1xf32> to vector<8x128xf32>
    %102 = arith.mulf %97, %101 : vector<8x128xf32>
    %103 = vector.broadcast %79 : vector<1x128xf32> to vector<8x128xf32>
    %104 = arith.mulf %102, %103 : vector<8x128xf32>
    %105 = vector.broadcast %80 : vector<1x128xf32> to vector<8x128xf32>
    %106 = arith.addf %104, %105 : vector<8x128xf32>
    %cst_41 = arith.constant 0.000000e+00 : f32
    %107 = vector.broadcast %cst_41 : f32 to vector<8x128xf32>
    %108 = arith.cmpf oge, %106, %107 : vector<8x128xf32>
    %cst_42 = arith.constant 0.824999988 : f32
    %109 = vector.broadcast %cst_42 : f32 to vector<8x128xf32>
    %110 = arith.mulf %109, %106 : vector<8x128xf32>
    %111 = arith.select %108, %106, %110 : vector<8x128xi1>, vector<8x128xf32>
    %112 = arith.truncf %111 : vector<8x128xf32> to vector<8x128xbf16>
    %c0_43 = arith.constant 0 : index
    %c0_44 = arith.constant 0 : index
    %113 = vector.load %arg5[%c0_43, %c0_44] : memref<128x64xbf16, #tpu.memory_space<vmem>>, vector<128x64xbf16>
    %cst_45 = arith.constant dense<0.000000e+00> : vector<8x64xf32>
    %114 = tpu.matmul %112, %113, %cst_45 {dimension_numbers = #tpu.dot_dimension_numbers<[1], [0], [0], [1], [0, 0, 1, 1], [], []>} : vector<8x128xbf16>, vector<128x64xbf16>, vector<8x64xf32> -> vector<8x64xf32>
    %c9 = arith.constant 9 : index
    %c0_46 = arith.constant 0 : index
    %115 = vector.load %arg7[%c9, %c0_46] : memref<16x128xf32, #tpu.memory_space<vmem>>, vector<1x64xf32>
    %c10 = arith.constant 10 : index
    %c0_47 = arith.constant 0 : index
    %116 = vector.load %arg7[%c10, %c0_47] : memref<16x128xf32, #tpu.memory_space<vmem>>, vector<1x64xf32>
    %c11 = arith.constant 11 : index
    %c0_48 = arith.constant 0 : index
    %117 = vector.load %arg7[%c11, %c0_48] : memref<16x128xf32, #tpu.memory_space<vmem>>, vector<1x64xf32>
    %118 = vector.broadcast %115 : vector<1x64xf32> to vector<8x64xf32>
    %119 = arith.addf %114, %118 : vector<8x64xf32>
    %cst_49 = arith.constant dense<0.000000e+00> : vector<8xf32>
    %120 = vector.multi_reduction <add>, %119, %cst_49 [1] : vector<8x64xf32> to vector<8xf32>
    %121 = vector.shape_cast %120 : vector<8xf32> to vector<8x1xf32>
    %cst_50 = arith.constant 6.400000e+01 : f32
    %122 = vector.broadcast %cst_50 : f32 to vector<8x1xf32>
    %123 = arith.divf %121, %122 : vector<8x1xf32>
    %124 = arith.mulf %119, %119 : vector<8x64xf32>
    %cst_51 = arith.constant dense<0.000000e+00> : vector<8xf32>
    %125 = vector.multi_reduction <add>, %124, %cst_51 [1] : vector<8x64xf32> to vector<8xf32>
    %126 = vector.shape_cast %125 : vector<8xf32> to vector<8x1xf32>
    %cst_52 = arith.constant 6.400000e+01 : f32
    %127 = vector.broadcast %cst_52 : f32 to vector<8x1xf32>
    %128 = arith.divf %126, %127 : vector<8x1xf32>
    %129 = arith.mulf %123, %123 : vector<8x1xf32>
    %130 = arith.subf %128, %129 : vector<8x1xf32>
    %cst_53 = arith.constant 0.000000e+00 : f32
    %131 = vector.broadcast %cst_53 : f32 to vector<8x1xf32>
    %132 = arith.maximumf %130, %131 : vector<8x1xf32>
    %133 = vector.broadcast %123 : vector<8x1xf32> to vector<8x64xf32>
    %134 = arith.subf %119, %133 : vector<8x64xf32>
    %cst_54 = arith.constant 9.99999974E-6 : f32
    %135 = vector.broadcast %cst_54 : f32 to vector<8x1xf32>
    %136 = arith.addf %132, %135 : vector<8x1xf32>
    %137 = math.rsqrt %136 : vector<8x1xf32>
    %138 = vector.broadcast %137 : vector<8x1xf32> to vector<8x64xf32>
    %139 = arith.mulf %134, %138 : vector<8x64xf32>
    %140 = vector.broadcast %116 : vector<1x64xf32> to vector<8x64xf32>
    %141 = arith.mulf %139, %140 : vector<8x64xf32>
    %142 = vector.broadcast %117 : vector<1x64xf32> to vector<8x64xf32>
    %143 = arith.addf %141, %142 : vector<8x64xf32>
    %c12 = arith.constant 12 : index
    %c0_55 = arith.constant 0 : index
    %144 = vector.load %arg7[%c12, %c0_55] : memref<16x128xf32, #tpu.memory_space<vmem>>, vector<1x128xf32>
    %145 = arith.truncf %143 : vector<8x64xf32> to vector<8x64xbf16>
    %c0_56 = arith.constant 0 : index
    %c0_57 = arith.constant 0 : index
    %146 = vector.load %arg6[%c0_56, %c0_57] : memref<64x128xbf16, #tpu.memory_space<vmem>>, vector<64x128xbf16>
    %cst_58 = arith.constant dense<0.000000e+00> : vector<8x128xf32>
    %147 = tpu.matmul %145, %146, %cst_58 {dimension_numbers = #tpu.dot_dimension_numbers<[1], [0], [0], [1], [0, 0, 1, 1], [], []>} : vector<8x64xbf16>, vector<64x128xbf16>, vector<8x128xf32> -> vector<8x128xf32>
    %148 = vector.broadcast %144 : vector<1x128xf32> to vector<8x128xf32>
    %149 = arith.addf %147, %148 : vector<8x128xf32>
    %150 = arith.negf %149 : vector<8x128xf32>
    %151 = math.exp %150 : vector<8x128xf32>
    %cst_59 = arith.constant 1.000000e+00 : f32
    %152 = vector.broadcast %cst_59 : f32 to vector<8x128xf32>
    %153 = arith.addf %152, %151 : vector<8x128xf32>
    %154 = arith.divf %152, %153 : vector<8x128xf32>
    %c0_60 = arith.constant 0 : index
    %c0_61 = arith.constant 0 : index
    %155 = vector.load %arg8[%c0_60, %c0_61] : memref<8x128xf32, #tpu.memory_space<vmem>>, vector<8x128xf32>
    tpu.vector_store %arg8[%c0_60, %c0_61], %154 {strides = array<i32>} : memref<8x128xf32, #tpu.memory_space<vmem>>, vector<8x128xf32>,
    return
  }
  func.func @transform_0(%arg0: i32) -> (i32, i32) {
    %c0_i32 = arith.constant 0 : i32
    %c0_i32_0 = arith.constant 0 : i32
    return %arg0, %c0_i32 : i32, i32
  }
  func.func @transform_1(%arg0: i32) -> (i32, i32) {
    %c0_i32 = arith.constant 0 : i32
    %c0_i32_0 = arith.constant 0 : i32
    %c0_i32_1 = arith.constant 0 : i32
    return %c0_i32, %c0_i32_0 : i32, i32
  }
  func.func @transform_2(%arg0: i32) -> (i32, i32) {
    %c0_i32 = arith.constant 0 : i32
    %c0_i32_0 = arith.constant 0 : i32
    %c0_i32_1 = arith.constant 0 : i32
    return %c0_i32, %c0_i32_0 : i32, i32
  }
  func.func @transform_3(%arg0: i32) -> (i32, i32) {
    %c0_i32 = arith.constant 0 : i32
    %c0_i32_0 = arith.constant 0 : i32
    %c0_i32_1 = arith.constant 0 : i32
    return %c0_i32, %c0_i32_0 : i32, i32
  }
  func.func @transform_4(%arg0: i32) -> (i32, i32) {
    %c0_i32 = arith.constant 0 : i32
    %c0_i32_0 = arith.constant 0 : i32
    %c0_i32_1 = arith.constant 0 : i32
    return %c0_i32, %c0_i32_0 : i32, i32
  }
  func.func @transform_5(%arg0: i32) -> (i32, i32) {
    %c0_i32 = arith.constant 0 : i32
    %c0_i32_0 = arith.constant 0 : i32
    %c0_i32_1 = arith.constant 0 : i32
    return %c0_i32, %c0_i32_0 : i32, i32
  }
  func.func @transform_6(%arg0: i32) -> (i32, i32) {
    %c0_i32 = arith.constant 0 : i32
    %c0_i32_0 = arith.constant 0 : i32
    %c0_i32_1 = arith.constant 0 : i32
    return %c0_i32, %c0_i32_0 : i32, i32
  }
  func.func @transform_7(%arg0: i32) -> (i32, i32) {
    %c0_i32 = arith.constant 0 : i32
    %c0_i32_0 = arith.constant 0 : i32
    return %arg0, %c0_i32 : i32, i32
  }
}

</mosaic_0001>

<llo_original>
// kernel: actor_forward.1
$region0: #{actor_forward.1}
  #allocation0 [shape = 'u32[]', space=smem, size = 0x4, offset = 0x4, fixed_abs, tag = 'smem constant byte address 0x4 - core index']
  #allocation1 [shape = 'u32[72,128]{1,0:T(1,128)}', space=vmem, size = 0x9000, scoped, tag = 'internal scratch']
  %s0 = inlined_call_operand.vmem [shape: f32[8,64], index: 0, kind: input, shape index: {}]
  %s1 = inlined_call_operand.vmem [shape: bf16[64,128], index: 1, kind: input, shape index: {}]
  %s2 = inlined_call_operand.vmem [shape: bf16[128,128], index: 2, kind: input, shape index: {}]
  %s3 = inlined_call_operand.hbm [shape: bf16[128,128], index: 3, kind: input, shape index: {}]
  %s4 = inlined_call_operand.vmem [shape: bf16[128,64], index: 4, kind: input, shape index: {}]
  %s5 = inlined_call_operand.hbm [shape: bf16[64,128], index: 5, kind: input, shape index: {}]
  %s6 = inlined_call_operand.hbm [shape: f32[16,128], index: 6, kind: input, shape index: {}]
  %s7 = inlined_call_operand.vmem [shape: f32[8,128], index: 7, kind: output, shape index: {}]
  %s8 = sld [smem:[#allocation0]]
  $region50: #{actor_forward.1} parent=0
    _
  %s10 = ssub.s32 1, %s8
  %s11 = scalar_select 0, %s10, %s8
  $region1: #{actor_forward.1} parent=0
    #allocation2 [shape = 'u8[32768]{0}', space=vmem, size = 0x8000, scoped, tag = 'input window, operand 3, single buffered']
    #allocation3 [shape = 's32[1]{0}', space=sflag, size = 0x4, scoped, tag = 'scoped memory for actor_forward.1']
    #allocation4 [shape = 'u8[16384]{0}', space=vmem, size = 0x4000, scoped, tag = 'input window, operand 5, single buffered']
    #allocation5 [shape = 's32[1]{0}', space=sflag, size = 0x4, scoped, tag = 'scoped memory for actor_forward.1']
    #allocation6 [shape = 'u8[8192]{0}', space=vmem, size = 0x2000, scoped, tag = 'input window, operand 6, single buffered']
    %12 = vsyncpa [#allocation3], 0
    %13 = vsyncpa [#allocation5], 0
    // Predicated region
    $region2: #{actor_forward.1} parent=1 // pred_check
      _
    $region3: #{actor_forward.1} parent=1 // pred_check_branch
      %15 = sbr.rel (0) target = $region5
    $region4: #{actor_forward.1} parent=1 // pred_region
      _
    $region5: #{actor_forward.1} parent=1 // pred_fallthru
      _
    // Predicated region
    $region6: #{actor_forward.1} parent=1 // pred_check
      _
    $region7: #{actor_forward.1} parent=1 // pred_check_branch
      %17 = sbr.rel (0) target = $region9
    $region8: #{actor_forward.1} parent=1 // pred_region
      _
    $region9: #{actor_forward.1} parent=1 // pred_fallthru
      _
    // Predicated region
    $region10: #{actor_forward.1} parent=1 // pred_check
      _
    $region11: #{actor_forward.1} parent=1 // pred_check_branch
      %19 = sbr.rel (0) target = $region13
    $region12: #{actor_forward.1} parent=1 // pred_region
      _
    $region13: #{actor_forward.1} parent=1 // pred_fallthru
      _
    // Predicated region
    $region14: #{actor_forward.1} parent=1 // pred_check
      _
    $region15: #{actor_forward.1} parent=1 // pred_check_branch
      %21 = sbr.rel (0) target = $region17
    $region16: #{actor_forward.1} parent=1 // pred_region
      %23 = vsyncadd [#allocation3], 0
      %s24 = sshll.u32 %s3, 4
      %s25 = int_to_ptr.hbm [resolvable:$true] %s24
      %s26 = sshll.u32 [#allocation2], 4
      %s27 = int_to_ptr.vmem [resolvable:$true] %s26
      %32 = dma.hbm_to_vmem [thread:$0]  %s25, 1024, %s27, [#allocation3], 64, 64, 4
    $region17: #{actor_forward.1} parent=1 // pred_fallthru
      _
    // Predicated region
    $region18: #{actor_forward.1} parent=1 // pred_check
      _
    $region19: #{actor_forward.1} parent=1 // pred_check_branch
      %34 = sbr.rel (0) target = $region21
    $region20: #{actor_forward.1} parent=1 // pred_region
      _
    $region21: #{actor_forward.1} parent=1 // pred_fallthru
      _
    // Predicated region
    $region22: #{actor_forward.1} parent=1 // pred_check
      _
    $region23: #{actor_forward.1} parent=1 // pred_check_branch
      %36 = sbr.rel (0) target = $region25
    $region24: #{actor_forward.1} parent=1 // pred_region
      %38 = vsyncadd [#allocation5], 0
      %s39 = sshll.u32 %s5, 4
      %s40 = int_to_ptr.hbm [resolvable:$true] %s39
      %s41 = sshll.u32 [#allocation4], 4
      %s42 = int_to_ptr.vmem [resolvable:$true] %s41
      %47 = dma.hbm_to_vmem [thread:$0]  %s40, 512, %s42, [#allocation5], 64, 64, 4
    $region25: #{actor_forward.1} parent=1 // pred_fallthru
      _
    // Predicated region
    $region26: #{actor_forward.1} parent=1 // pred_check
      _
    $region27: #{actor_forward.1} parent=1 // pred_check_branch
      %49 = sbr.rel (0) target = $region29
    $region28: #{actor_forward.1} parent=1 // pred_region
      %51 = vsyncadd [#allocation5], 0
      %s52 = sshll.u32 %s6, 4
      %s53 = int_to_ptr.hbm [resolvable:$true] %s52
      %s54 = sshll.u32 [#allocation6], 4
      %s55 = int_to_ptr.vmem [resolvable:$true] %s54
      %60 = dma.hbm_to_vmem [thread:$0]  %s53, 256, %s55, [#allocation5], 128, 128, 8
    $region29: #{actor_forward.1} parent=1 // pred_fallthru
      _
    // Predicated region
    $region30: #{actor_forward.1} parent=1 // pred_check
      _
    $region31: #{actor_forward.1} parent=1 // pred_check_branch
      %62 = sbr.rel (0) target = $region33
    $region32: #{actor_forward.1} parent=1 // pred_region
      %64 = dma.done [#allocation3], 1024
    $region33: #{actor_forward.1} parent=1 // pred_fallthru
      _
    // Predicated region
    $region34: #{actor_forward.1} parent=1 // pred_check
      _
    $region35: #{actor_forward.1} parent=1 // pred_check_branch
      %66 = sbr.rel (0) target = $region37
    $region36: #{actor_forward.1} parent=1 // pred_region
      %68 = dma.done [#allocation5], 512
    $region37: #{actor_forward.1} parent=1 // pred_fallthru
      _
    // Predicated region
    $region38: #{actor_forward.1} parent=1 // pred_check
      _
    $region39: #{actor_forward.1} parent=1 // pred_check_branch
      %70 = sbr.rel (0) target = $region41
    $region40: #{actor_forward.1} parent=1 // pred_region
      %72 = dma.done [#allocation5], 256
    $region41: #{actor_forward.1} parent=1 // pred_fallthru
      _
    %v74 = vld [vmem:[%s0] sm:$0xff]
    %v75 = vpack.c.bf16 %v74, %v74
    %v76 = vld [vmem:[%s1] sm:$0xf]
    %v77 = vld [vmem:[%s1 + $0x4] sm:$0xf]
    %v78 = vld [vmem:[%s1 + $0x8] sm:$0xf]
    %v79 = vld [vmem:[%s1 + $0xc] sm:$0xf]
    %v80 = vld [vmem:[%s1 + $0x10] sm:$0xf]
    %v81 = vld [vmem:[%s1 + $0x14] sm:$0xf]
    %v82 = vld [vmem:[%s1 + $0x18] sm:$0xf]
    %v83 = vld [vmem:[%s1 + $0x1c] sm:$0xf]
    %v84 = vld [vmem:[#allocation6] sm:$0x1]
    %v85 = vld [vmem:[#allocation6 + $0x1] sm:$0x1]
    %v86 = vld [vmem:[#allocation6 + $0x2] sm:$0x1]
    %v87 = vperm.slane %v84, 0
    %v96 = vunpack.c.l.b16 %v76
    %v97 = vunpack.c.l.b16 %v77
    %v98 = vunpack.c.l.b16 %v78
    %v99 = vunpack.c.l.b16 %v79
    %v100 = vunpack.c.l.b16 %v80
    %v101 = vunpack.c.l.b16 %v81
    %v102 = vunpack.c.l.b16 %v82
    %v103 = vunpack.c.l.b16 %v83
    %v104 = vpack.c.b16 %v97, %v96
    %v105 = vpack.c.b16 %v99, %v98
    %v106 = vpack.c.b16 %v101, %v100
    %v107 = vpack.c.b16 %v103, %v102
    %vm112 = vcmask 523264
    %v114 = vsel %vm112, %v75, 0
    %116 = vmatpush.bf16.msra.mxu0 0
    %117 = vmatpush.bf16.msra.mxu0 0
    %118 = vmatpush.bf16.msra.mxu0 0
    %119 = vmatpush.bf16.msra.mxu0 0
    %120 = vmatpush.bf16.msra.mxu0 %v107
    %121 = vmatpush.bf16.msra.mxu0 %v106
    %122 = vmatpush.bf16.msra.mxu0 %v105
    %123 = vmatpush.bf16.msra.mxu0 %v104
    %124 = vmatmul.bf16.gmra.mxu0 %v114
    %v125 = vpop.f32.mrf.mxu0
    %v126 = vadd.f32 %v87, %v125
    %v127 = vpop.f32.mrf.mxu0
    %128 = vdwg.mxu0
    %129 = vadd.xlane.f32.xlu0 %v126
    %v130 = vpop.xlane.xlu0 %129
    %v131 = vrcp.pop 128.0
    %v132 = vmul.f32 128.0, %v131
    %v133 = vsub.f32 1.0, %v132
    %v134 = vmul.f32 %v131, %v133
    %v135 = vadd.f32 %v131, %v134
    %vm136 = vweird.f32 %v131
    %v137 = vsel %vm136, %v131, %v135
    %v138 = vmul.f32 %v130, %v137
    %v139 = vmul.f32 %v126, %v126
    %140 = vadd.xlane.f32.xlu0 %v139
    %v141 = vpop.xlane.xlu0 %140
    %v142 = vmul.f32 %v141, %v137
    %v143 = vmul.f32 %v138, %v138
    %v144 = vsub.f32 %v142, %v143
    %v145 = vmax.f32 %v144, 0.0
    %v146 = vsub.f32 %v126, %v138
    %v147 = vadd.f32 %v145, 1e-05
    %v148 = vrsqrt.pop %v147
    %v149 = vmul.f32 %v148, %v147
    %v150 = vmul.f32 %v149, %v148
    %v151 = vmul.f32 0.5, %v150
    %v152 = vsub.f32 1.5, %v151
    %v153 = vmul.f32 %v148, %v152
    %vm154 = vweird.f32 %v147
    %vm155 = vweird.f32 %v148
    %vm156 = vmor %vm154, %vm155
    %v157 = vsel %vm156, %v148, %v153
    %v158 = vmul.f32 %v146, %v157
    %v159 = vperm.slane %v85, 0
    %v160 = vmul.f32 %v158, %v159
    %v161 = vperm.slane %v86, 0
    %v162 = vadd.f32 %v160, %v161
    %vm163 = vcmp.ge.f32.partialorder %v162, 0.0
    %v164 = vmul.f32 %v162, 0.17
    %v165 = vsel %vm163, %v162, %v164
    %v166 = vpack.c.bf16 %v165, %v165
    %v167 = vld [vmem:[%s2] sm:$0xf]
    %v168 = vld [vmem:[%s2 + $0x4] sm:$0xf]
    %v169 = vld [vmem:[%s2 + $0x8] sm:$0xf]
    %v170 = vld [vmem:[%s2 + $0xc] sm:$0xf]
    %v171 = vld [vmem:[%s2 + $0x10] sm:$0xf]
    %v172 = vld [vmem:[%s2 + $0x14] sm:$0xf]
    %v173 = vld [vmem:[%s2 + $0x18] sm:$0xf]
    %v174 = vld [vmem:[%s2 + $0x1c] sm:$0xf]
    %v175 = vld [vmem:[%s2 + $0x20] sm:$0xf]
    %v176 = vld [vmem:[%s2 + $0x24] sm:$0xf]
    %v177 = vld [vmem:[%s2 + $0x28] sm:$0xf]
    %v178 = vld [vmem:[%s2 + $0x2c] sm:$0xf]
    %v179 = vld [vmem:[%s2 + $0x30] sm:$0xf]
    %v180 = vld [vmem:[%s2 + $0x34] sm:$0xf]
    %v181 = vld [vmem:[%s2 + $0x38] sm:$0xf]
    %v182 = vld [vmem:[%s2 + $0x3c] sm:$0xf]
    %v183 = vld [vmem:[#allocation6 + $0x3] sm:$0x1]
    %v184 = vld [vmem:[#allocation6 + $0x4] sm:$0x1]
    %v185 = vld [vmem:[#allocation6 + $0x5] sm:$0x1]
    %v186 = vperm.slane %v183, 0
    %v203 = vunpack.c.l.b16 %v167
    %v204 = vunpack.c.l.b16 %v168
    %v205 = vunpack.c.l.b16 %v169
    %v206 = vunpack.c.l.b16 %v170
    %v207 = vunpack.c.l.b16 %v171
    %v208 = vunpack.c.l.b16 %v172
    %v209 = vunpack.c.l.b16 %v173
    %v210 = vunpack.c.l.b16 %v174
    %v211 = vunpack.c.l.b16 %v175
    %v212 = vunpack.c.l.b16 %v176
    %v213 = vunpack.c.l.b16 %v177
    %v214 = vunpack.c.l.b16 %v178
    %v215 = vunpack.c.l.b16 %v179
    %v216 = vunpack.c.l.b16 %v180
    %v217 = vunpack.c.l.b16 %v181
    %v218 = vunpack.c.l.b16 %v182
    %v219 = vpack.c.b16 %v204, %v203
    %v220 = vpack.c.b16 %v206, %v205
    %v221 = vpack.c.b16 %v208, %v207
    %v222 = vpack.c.b16 %v210, %v209
    %v223 = vpack.c.b16 %v212, %v211
    %v224 = vpack.c.b16 %v214, %v213
    %v225 = vpack.c.b16 %v216, %v215
    %v226 = vpack.c.b16 %v218, %v217
    %235 = vmatpush.bf16.msra.mxu0 %v226
    %236 = vmatpush.bf16.msra.mxu0 %v225
    %237 = vmatpush.bf16.msra.mxu0 %v224
    %238 = vmatpush.bf16.msra.mxu0 %v223
    %239 = vmatpush.bf16.msra.mxu0 %v222
    %240 = vmatpush.bf16.msra.mxu0 %v221
    %241 = vmatpush.bf16.msra.mxu0 %v220
    %242 = vmatpush.bf16.msra.mxu0 %v219
    %243 = vmatmul.bf16.gmra.mxu0 %v166
    %v244 = vpop.f32.mrf.mxu0
    %v245 = vadd.f32 %v186, %v244
    %v246 = vpop.f32.mrf.mxu0
    %247 = vdwg.mxu0
    %248 = vadd.xlane.f32.xlu0 %v245
    %v249 = vpop.xlane.xlu0 %248
    %v250 = vmul.f32 %v249, %v137
    %v251 = vmul.f32 %v245, %v245
    %252 = vadd.xlane.f32.xlu0 %v251
    %v253 = vpop.xlane.xlu0 %252
    %v254 = vmul.f32 %v253, %v137
    %v255 = vmul.f32 %v250, %v250
    %v256 = vsub.f32 %v254, %v255
    %v257 = vmax.f32 %v256, 0.0
    %v258 = vsub.f32 %v245, %v250
    %v259 = vadd.f32 %v257, 1e-05
    %v260 = vrsqrt.pop %v259
    %v261 = vmul.f32 %v260, %v259
    %v262 = vmul.f32 %v261, %v260
    %v263 = vmul.f32 0.5, %v262
    %v264 = vsub.f32 1.5, %v263
    %v265 = vmul.f32 %v260, %v264
    %vm266 = vweird.f32 %v259
    %vm267 = vweird.f32 %v260
    %vm268 = vmor %vm266, %vm267
    %v269 = vsel %vm268, %v260, %v265
    %v270 = vmul.f32 %v258, %v269
    %v271 = vperm.slane %v184, 0
    %v272 = vmul.f32 %v270, %v271
    %v273 = vperm.slane %v185, 0
    %v274 = vadd.f32 %v272, %v273
    %vm275 = vcmp.ge.f32.partialorder %v274, 0.0
    %v276 = vmul.f32 %v274, 0.495
    %v277 = vsel %vm275, %v274, %v276
    %v278 = vpack.c.bf16 %v277, %v277
    %v279 = vld [vmem:[#allocation2] sm:$0xf]
    %v280 = vld [vmem:[#allocation2 + $0x4] sm:$0xf]
    %v281 = vld [vmem:[#allocation2 + $0x8] sm:$0xf]
    %v282 = vld [vmem:[#allocation2 + $0xc] sm:$0xf]
    %v283 = vld [vmem:[#allocation2 + $0x10] sm:$0xf]
    %v284 = vld [vmem:[#allocation2 + $0x14] sm:$0xf]
    %v285 = vld [vmem:[#allocation2 + $0x18] sm:$0xf]
    %v286 = vld [vmem:[#allocation2 + $0x1c] sm:$0xf]
    %v287 = vld [vmem:[#allocation2 + $0x20] sm:$0xf]
    %v288 = vld [vmem:[#allocation2 + $0x24] sm:$0xf]
    %v289 = vld [vmem:[#allocation2 + $0x28] sm:$0xf]
    %v290 = vld [vmem:[#allocation2 + $0x2c] sm:$0xf]
    %v291 = vld [vmem:[#allocation2 + $0x30] sm:$0xf]
    %v292 = vld [vmem:[#allocation2 + $0x34] sm:$0xf]
    %v293 = vld [vmem:[#allocation2 + $0x38] sm:$0xf]
    %v294 = vld [vmem:[#allocation2 + $0x3c] sm:$0xf]
    %v295 = vld [vmem:[#allocation6 + $0x6] sm:$0x1]
    %v296 = vld [vmem:[#allocation6 + $0x7] sm:$0x1]
    %v297 = vld [vmem:[#allocation6 + $0x8] sm:$0x1]
    %v298 = vperm.slane %v295, 0
    %v315 = vunpack.c.l.b16 %v279
    %v316 = vunpack.c.l.b16 %v280
    %v317 = vunpack.c.l.b16 %v281
    %v318 = vunpack.c.l.b16 %v282
    %v319 = vunpack.c.l.b16 %v283
    %v320 = vunpack.c.l.b16 %v284
    %v321 = vunpack.c.l.b16 %v285
    %v322 = vunpack.c.l.b16 %v286
    %v323 = vunpack.c.l.b16 %v287
    %v324 = vunpack.c.l.b16 %v288
    %v325 = vunpack.c.l.b16 %v289
    %v326 = vunpack.c.l.b16 %v290
    %v327 = vunpack.c.l.b16 %v291
    %v328 = vunpack.c.l.b16 %v292
    %v329 = vunpack.c.l.b16 %v293
    %v330 = vunpack.c.l.b16 %v294
    %v331 = vpack.c.b16 %v316, %v315
    %v332 = vpack.c.b16 %v318, %v317
    %v333 = vpack.c.b16 %v320, %v319
    %v334 = vpack.c.b16 %v322, %v321
    %v335 = vpack.c.b16 %v324, %v323
    %v336 = vpack.c.b16 %v326, %v325
    %v337 = vpack.c.b16 %v328, %v327
    %v338 = vpack.c.b16 %v330, %v329
    %347 = vmatpush.bf16.msra.mxu0 %v338
    %348 = vmatpush.bf16.msra.mxu0 %v337
    %349 = vmatpush.bf16.msra.mxu0 %v336
    %350 = vmatpush.bf16.msra.mxu0 %v335
    %351 = vmatpush.bf16.msra.mxu0 %v334
    %352 = vmatpush.bf16.msra.mxu0 %v333
    %353 = vmatpush.bf16.msra.mxu0 %v332
    %354 = vmatpush.bf16.msra.mxu0 %v331
    %355 = vmatmul.bf16.gmra.mxu0 %v278
    %v356 = vpop.f32.mrf.mxu0
    %v357 = vadd.f32 %v298, %v356
    %v358 = vpop.f32.mrf.mxu0
    %359 = vdwg.mxu0
    %360 = vadd.xlane.f32.xlu0 %v357
    %v361 = vpop.xlane.xlu0 %360
    %v362 = vmul.f32 %v361, %v137
    %v363 = vmul.f32 %v357, %v357
    %364 = vadd.xlane.f32.xlu0 %v363
    %v365 = vpop.xlane.xlu0 %364
    %v366 = vmul.f32 %v365, %v137
    %v367 = vmul.f32 %v362, %v362
    %v368 = vsub.f32 %v366, %v367
    %v369 = vmax.f32 %v368, 0.0
    %v370 = vsub.f32 %v357, %v362
    %v371 = vadd.f32 %v369, 1e-05
    %v372 = vrsqrt.pop %v371
    %v373 = vmul.f32 %v372, %v371
    %v374 = vmul.f32 %v373, %v372
    %v375 = vmul.f32 0.5, %v374
    %v376 = vsub.f32 1.5, %v375
    %v377 = vmul.f32 %v372, %v376
    %vm378 = vweird.f32 %v371
    %vm379 = vweird.f32 %v372
    %vm380 = vmor %vm378, %vm379
    %v381 = vsel %vm380, %v372, %v377
    %v382 = vmul.f32 %v370, %v381
    %v383 = vperm.slane %v296, 0
    %v384 = vmul.f32 %v382, %v383
    %v385 = vperm.slane %v297, 0
    %v386 = vadd.f32 %v384, %v385
    %vm387 = vcmp.ge.f32.partialorder %v386, 0.0
    %v388 = vmul.f32 %v386, 0.825
    %v389 = vsel %vm387, %v386, %v388
    %v390 = vpack.c.bf16 %v389, %v389
    %v391 = vld [vmem:[%s4] sm:$0xf]
    %v392 = vld [vmem:[%s4 + $0x4] sm:$0xf]
    %v393 = vld [vmem:[%s4 + $0x8] sm:$0xf]
    %v394 = vld [vmem:[%s4 + $0xc] sm:$0xf]
    %v395 = vld [vmem:[%s4 + $0x10] sm:$0xf]
    %v396 = vld [vmem:[%s4 + $0x14] sm:$0xf]
    %v397 = vld [vmem:[%s4 + $0x18] sm:$0xf]
    %v398 = vld [vmem:[%s4 + $0x1c] sm:$0xf]
    %v399 = vld [vmem:[%s4 + $0x20] sm:$0xf]
    %v400 = vld [vmem:[%s4 + $0x24] sm:$0xf]
    %v401 = vld [vmem:[%s4 + $0x28] sm:$0xf]
    %v402 = vld [vmem:[%s4 + $0x2c] sm:$0xf]
    %v403 = vld [vmem:[%s4 + $0x30] sm:$0xf]
    %v404 = vld [vmem:[%s4 + $0x34] sm:$0xf]
    %v405 = vld [vmem:[%s4 + $0x38] sm:$0xf]
    %v406 = vld [vmem:[%s4 + $0x3c] sm:$0xf]
    %v407 = vld [vmem:[#allocation6 + $0x9] sm:$0x1]
    %v408 = vld [vmem:[#allocation6 + $0xa] sm:$0x1]
    %v409 = vld [vmem:[#allocation6 + $0xb] sm:$0x1]
    %v410 = vperm.slane %v407, 0
    %v427 = vunpack.c.l.b16 %v391
    %v428 = vunpack.c.l.b16 %v392
    %v429 = vunpack.c.l.b16 %v393
    %v430 = vunpack.c.l.b16 %v394
    %v431 = vunpack.c.l.b16 %v395
    %v432 = vunpack.c.l.b16 %v396
    %v433 = vunpack.c.l.b16 %v397
    %v434 = vunpack.c.l.b16 %v398
    %v435 = vunpack.c.l.b16 %v399
    %v436 = vunpack.c.l.b16 %v400
    %v437 = vunpack.c.l.b16 %v401
    %v438 = vunpack.c.l.b16 %v402
    %v439 = vunpack.c.l.b16 %v403
    %v440 = vunpack.c.l.b16 %v404
    %v441 = vunpack.c.l.b16 %v405
    %v442 = vunpack.c.l.b16 %v406
    %v443 = vpack.c.b16 %v428, %v427
    %v444 = vpack.c.b16 %v430, %v429
    %v445 = vpack.c.b16 %v432, %v431
    %v446 = vpack.c.b16 %v434, %v433
    %v447 = vpack.c.b16 %v436, %v435
    %v448 = vpack.c.b16 %v438, %v437
    %v449 = vpack.c.b16 %v440, %v439
    %v450 = vpack.c.b16 %v442, %v441
    %459 = vmatpush.bf16.msra.mxu0 %v450
    %460 = vmatpush.bf16.msra.mxu0 %v449
    %461 = vmatpush.bf16.msra.mxu0 %v448
    %462 = vmatpush.bf16.msra.mxu0 %v447
    %463 = vmatpush.bf16.msra.mxu0 %v446
    %464 = vmatpush.bf16.msra.mxu0 %v445
    %465 = vmatpush.bf16.msra.mxu0 %v444
    %466 = vmatpush.bf16.msra.mxu0 %v443
    %467 = vmatmul.bf16.gmra.mxu0 %v390
    %v468 = vpop.f32.mrf.mxu0
    %v469 = vadd.f32 %v410, %v468
    %v470 = vpop.f32.mrf.mxu0
    %471 = vdwg.mxu0
    %v472 = vsel %vm112, %v469, 0.0
    %473 = vadd.xlane.f32.xlu0 %v472
    %v474 = vpop.xlane.xlu0 %473
    %v475 = vrcp.pop 64.0
    %v476 = vmul.f32 64.0, %v475
    %v477 = vsub.f32 1.0, %v476
    %v478 = vmul.f32 %v475, %v477
    %v479 = vadd.f32 %v475, %v478
    %vm480 = vweird.f32 %v475
    %v481 = vsel %vm480, %v475, %v479
    %v482 = vmul.f32 %v474, %v481
    %v483 = vmul.f32 %v469, %v469
    %v484 = vsel %vm112, %v483, 0.0
    %485 = vadd.xlane.f32.xlu0 %v484
    %v486 = vpop.xlane.xlu0 %485
    %v487 = vmul.f32 %v486, %v481
    %v488 = vmul.f32 %v482, %v482
    %v489 = vsub.f32 %v487, %v488
    %v490 = vmax.f32 %v489, 0.0
    %v491 = vsub.f32 %v469, %v482
    %v492 = vadd.f32 %v490, 1e-05
    %v493 = vrsqrt.pop %v492
    %v494 = vmul.f32 %v493, %v492
    %v495 = vmul.f32 %v494, %v493
    %v496 = vmul.f32 0.5, %v495
    %v497 = vsub.f32 1.5, %v496
    %v498 = vmul.f32 %v493, %v497
    %vm499 = vweird.f32 %v492
    %vm500 = vweird.f32 %v493
    %vm501 = vmor %vm499, %vm500
    %v502 = vsel %vm501, %v493, %v498
    %v503 = vmul.f32 %v491, %v502
    %v504 = vperm.slane %v408, 0
    %v505 = vmul.f32 %v503, %v504
    %v506 = vperm.slane %v409, 0
    %v507 = vadd.f32 %v505, %v506
    %v508 = vld [vmem:[#allocation6 + $0xc] sm:$0x1]
    %v509 = vpack.c.bf16 %v507, %v507
    %v510 = vld [vmem:[#allocation4] sm:$0xf]
    %v511 = vld [vmem:[#allocation4 + $0x4] sm:$0xf]
    %v512 = vld [vmem:[#allocation4 + $0x8] sm:$0xf]
    %v513 = vld [vmem:[#allocation4 + $0xc] sm:$0xf]
    %v514 = vld [vmem:[#allocation4 + $0x10] sm:$0xf]
    %v515 = vld [vmem:[#allocation4 + $0x14] sm:$0xf]
    %v516 = vld [vmem:[#allocation4 + $0x18] sm:$0xf]
    %v517 = vld [vmem:[#allocation4 + $0x1c] sm:$0xf]
    %v518 = vperm.slane %v508, 0
    %v527 = vunpack.c.l.b16 %v510
    %v528 = vunpack.c.l.b16 %v511
    %v529 = vunpack.c.l.b16 %v512
    %v530 = vunpack.c.l.b16 %v513
    %v531 = vunpack.c.l.b16 %v514
    %v532 = vunpack.c.l.b16 %v515
    %v533 = vunpack.c.l.b16 %v516
    %v534 = vunpack.c.l.b16 %v517
    %v535 = vpack.c.b16 %v528, %v527
    %v536 = vpack.c.b16 %v530, %v529
    %v537 = vpack.c.b16 %v532, %v531
    %v538 = vpack.c.b16 %v534, %v533
    %v544 = vsel %vm112, %v509, 0
    %546 = vmatpush.bf16.msra.mxu0 0
    %547 = vmatpush.bf16.msra.mxu0 0
    %548 = vmatpush.bf16.msra.mxu0 0
    %549 = vmatpush.bf16.msra.mxu0 0
    %550 = vmatpush.bf16.msra.mxu0 %v538
    %551 = vmatpush.bf16.msra.mxu0 %v537
    %552 = vmatpush.bf16.msra.mxu0 %v536
    %553 = vmatpush.bf16.msra.mxu0 %v535
    %554 = vmatmul.bf16.gmra.mxu0 %v544
    %v555 = vpop.f32.mrf.mxu0
    %v556 = vadd.f32 %v518, %v555
    %v557 = vpop.f32.mrf.mxu0
    %558 = vdwg.mxu0
    %v559 = vxor.u32 %v556, 2147483648
    %v560 = vmul.f32 %v559, 1.442695
    %v561 = vpow.pop %v560
    %v562 = vadd.f32 %v561, 1.0
    %v563 = vrcp.pop %v562
    %v564 = vmul.f32 %v562, %v563
    %v565 = vsub.f32 1.0, %v564
    %v566 = vmul.f32 %v563, %v565
    %v567 = vadd.f32 %v563, %v566
    %vm568 = vweird.f32 %v562
    %vm569 = vweird.f32 %v563
    %vm570 = vmor %vm568, %vm569
    %v571 = vsel %vm570, %v563, %v567
    %v572 = vand.u32 2147483647, %v562
    %vm573 = vcmp.eq.f32.partialorder %v572, 8.507059e+37
    %v574 = vand.u32 %v562, 2147483648
    %v575 = vor.u32 1.1754944e-38, %v574
    %v576 = vsel %vm573, %v575, %v571
    %v577 = vmul.f32 1.0, %v576
    %578 = vst [vmem:[%s7] sm:$0xff] %v577
    // Predicated region
    $region42: #{actor_forward.1} parent=1 // pred_check
      _
    $region43: #{actor_forward.1} parent=1 // pred_check_branch
      %580 = sbr.rel (0) target = $region45
    $region44: #{actor_forward.1} parent=1 // pred_region
      _
    $region45: #{actor_forward.1} parent=1 // pred_fallthru
      _
    // Predicated region
    $region46: #{actor_forward.1} parent=1 // pred_check
      _
    $region47: #{actor_forward.1} parent=1 // pred_check_branch
      %582 = sbr.rel (0) target = $region49
    $region48: #{actor_forward.1} parent=1 // pred_region
      _
    $region49: #{actor_forward.1} parent=1 // pred_fallthru
      _
    %583 = vsyncpa [#allocation3], 1
    %584 = vsyncpa [#allocation5], 1

</llo_original>
